<compile_context>
chip_gen: v5e
topology: v5e:2x2
jax: 0.10.0
libtpu: 0.0.40
codegen_flags: <defaults>
</compile_context>

<pallas_src>
import functools

import jax
import jax.numpy as jnp
from jax import lax
from jax.experimental import pallas as pl
from jax.experimental.pallas import tpu as pltpu


def _round_up(x, m):
    return (x + m - 1) // m * m


def _scatter_sum_kernel(counts_ref, idx_ref, x_ref, o_ref, *,
                        ti, n_chunks, compute_dtype):
    o = pl.program_id(0)          # output-tile index (parallel)
    to = o_ref.shape[0]
    out_start = o * to

    # Fresh output VMEM buffer each grid step -> zero, then accumulate into it
    # directly (output dtype is f32, so no extra accumulator scratch needed).
    o_ref[...] = jnp.zeros_like(o_ref)

    # Hoisted out of the chunk loop (JAX does not CSE broadcast/iota).
    rows = lax.broadcasted_iota(jnp.int32, (to, ti), 0)          # (TO, TI)

    def body(c, carry):
        @pl.when(counts_ref[o * n_chunks + c] > 0)               # skip empty chunks
        def _():
            start = pl.multiple_of(c * ti, ti)
            idx_chunk = idx_ref[pl.ds(c, 1), :]                  # (1, TI) int32
            x_chunk = x_ref[pl.ds(start, ti), :].astype(compute_dtype)  # (TI, F)
            # one_hot[j, i] = (index[chunk, i] == out_start + j), built as
            # (TO, TI) so the dot is a plain row-major contraction (no vxpose).
            one_hot = (rows == (idx_chunk - out_start)).astype(compute_dtype)
            o_ref[...] += jnp.dot(one_hot, x_chunk,
                                  preferred_element_type=jnp.float32
                                  ).astype(o_ref.dtype)
        return carry

    lax.fori_loop(0, n_chunks, body, 0, unroll=n_chunks <= 8)


def scatter_sum(x, index, num_outputs, *, to=512, ti=512,
                compute_dtype=jnp.float32):
    """out[j, f] = sum_{i: index[i]==j} x[i, f].

    Out-of-range indices are silently dropped (torch's scatter would error).
    Non-divisible shapes are handled by padding rows with a sentinel index and
    padding/cropping the output rows.
    """
    n_in, f = x.shape

    # Clamp tiles to the (sublane-aligned) problem size.
    ti = min(ti, _round_up(n_in, 8))
    to = min(to, _round_up(num_outputs, 8))

    n_in_p = _round_up(n_in, ti)
    n_out_p = _round_up(num_outputs, to)
    n_chunks = n_in_p // ti
    n_otiles = n_out_p // to

    idx = index.astype(jnp.int32)
    if n_in_p != n_in:
        # Sentinel index == n_out_p never matches any output row -> padded
        # rows contribute nothing.
        x = jnp.pad(x, ((0, n_in_p - n_in), (0, 0)))
        idx = jnp.pad(idx, (0, n_in_p - n_in), constant_values=n_out_p)
    idx2d = idx.reshape(n_chunks, ti)

    # Per-(output-tile, input-chunk) hit counts, flattened to 1-D for cheap
    # SMEM packing.  Out-of-range / sentinel indices are dropped.
    otile = idx // to
    chunk = jnp.arange(n_in_p, dtype=jnp.int32) // ti
    counts = jnp.zeros((n_otiles * n_chunks,), jnp.int32).at[
        otile * n_chunks + chunk].add(1, mode='drop')

    kernel = functools.partial(_scatter_sum_kernel, ti=ti, n_chunks=n_chunks,
                               compute_dtype=compute_dtype)

    out = pl.pallas_call(
        kernel,
        out_shape=jax.ShapeDtypeStruct((n_out_p, f), x.dtype),
        grid_spec=pltpu.PrefetchScalarGridSpec(
            num_scalar_prefetch=1,            # counts -> SMEM before the grid
            grid=(n_otiles,),                 # one step per output tile
            in_specs=[
                # index and x are fully VMEM-resident: constant block index
                # means Pallas DMAs them exactly once across the whole grid.
                pl.BlockSpec((n_chunks, ti), lambda o, counts: (0, 0)),
                pl.BlockSpec((n_in_p, f), lambda o, counts: (0, 0)),
            ],
            out_specs=pl.BlockSpec((to, f), lambda o, counts: (o, 0)),
        ),
        compiler_params=pltpu.CompilerParams(
            dimension_semantics=("parallel",),
        ),
    )(counts, idx2d, x)

    if n_out_p != num_outputs:
        out = out[:num_outputs]
    return out


class ScatterOpPallas:
    """Mirror of the torch ScatterOp module (reduce='sum', dim=0)."""

    def __init__(self, num_inputs=4096, num_features=128, num_outputs=65536,
                 seed=0):
        k1, k2 = jax.random.split(jax.random.PRNGKey(seed))
        self.num_outputs = num_outputs
        self.input = jax.random.normal(k1, (num_inputs, num_features),
                                       jnp.float32)
        self.index = jax.random.randint(k2, (num_inputs,), 0, num_outputs,
                                        jnp.int32)
        self.output = self(self.input, self.index, None)[-1]

    def __call__(self, inp, index, _):
        return (inp, index, scatter_sum(inp, index, self.num_outputs))

    def loop_inputs(self):
        return [self.input, self.index, self.output]


if __name__ == "__main__":
    # Small synthetic shapes (real model: 4096 x 128 -> 65536 outputs).
    num_inputs, num_features, num_outputs = 128, 128, 256
    mod = ScatterOpPallas(num_inputs=num_inputs, num_features=num_features,
                          num_outputs=num_outputs, seed=0)

    inp, idx, out = mod(mod.input, mod.index, None)
    out = jax.block_until_ready(out)

    # Reference scatter-sum in plain JAX.
    ref = jnp.zeros((num_outputs, num_features), jnp.float32).at[idx].add(inp)
    assert jnp.allclose(out, ref, atol=1e-5, rtol=1e-5), "mismatch (default tiles)"

    # Exercise the multi-tile grid + chunk-skip path with small tiles.
    out_small = jax.block_until_ready(
        scatter_sum(mod.input, mod.index, num_outputs, to=64, ti=32))
    assert jnp.allclose(out_small, ref, atol=1e-5, rtol=1e-5), "mismatch (small tiles)"

    # Exercise the bf16-MXU path (one rounding of x; accumulation stays f32).
    out_bf16 = jax.block_until_ready(
        scatter_sum(mod.input, mod.index, num_outputs,
                    compute_dtype=jnp.bfloat16))
    assert jnp.allclose(out_bf16, ref, atol=5e-2, rtol=5e-2), "mismatch (bf16)"

    print("KERNEL_OK")
</pallas_src>

<mosaic_0001>
module attributes {stable_mosaic.version = 11 : i64} {
  func.func @_scatter_sum_kernel(%arg0: i32, %arg1: memref<1xi32, #tpu.memory_space<smem>>, %arg2: memref<1x128xi32, #tpu.memory_space<vmem>>, %arg3: memref<128x128xf32, #tpu.memory_space<vmem>>, %arg4: memref<256x128xf32, #tpu.memory_space<vmem>>) attributes {dimension_semantics = [#tpu.dimension_semantics<parallel>], iteration_bounds = array<i64: 1>, scalar_prefetch = 1 : i64, scratch_operands = 0 : i64, tpu.core_type = #tpu.core_type<tc>, window_params = [{pipeline_mode = #tpu.pipeline_mode<synchronous>, transform_indices = @transform_0, window_bounds = array<i64: 1, 128>}, {pipeline_mode = #tpu.pipeline_mode<synchronous>, transform_indices = @transform_1, window_bounds = array<i64: 128, 128>}, {transform_indices = @transform_2, window_bounds = array<i64: 256, 128>}]} {
    %c256_i32 = arith.constant 256 : i32
    %0 = arith.muli %arg0, %c256_i32 : i32
    %cst = arith.constant 0.000000e+00 : f32
    %1 = vector.broadcast %cst : f32 to vector<256x128xf32>
    %c0 = arith.constant 0 : index
    %c0_0 = arith.constant 0 : index
    %2 = vector.load %arg4[%c0, %c0_0] : memref<256x128xf32, #tpu.memory_space<vmem>>, vector<256x128xf32>
    tpu.vector_store %arg4[%c0, %c0_0], %1 {strides = array<i32>} : memref<256x128xf32, #tpu.memory_space<vmem>>, vector<256x128xf32>,
    %3 = tpu.iota {dimensions = array<i32: 0>} : vector<256x128xi32>
    %c0_i32 = arith.constant 0 : i32
    %c1_i32 = arith.constant 1 : i32
    %4 = arith.muli %arg0, %c1_i32 : i32
    %5 = arith.addi %4, %c0_i32 : i32
    %6 = arith.index_cast %5 : i32 to index
    %7 = memref.load %arg1[%6] : memref<1xi32, #tpu.memory_space<smem>>
    %c0_i32_1 = arith.constant 0 : i32
    %8 = arith.cmpi sgt, %7, %c0_i32_1 : i32
    %9 = arith.extui %8 : i1 to i32
    %c0_i32_2 = arith.constant 0 : i32
    %10 = arith.cmpi ne, %9, %c0_i32_2 : i32
    scf.if %10 {
      %c128_i32 = arith.constant 128 : i32
      %11 = arith.muli %c0_i32, %c128_i32 : i32
      %12 = tpu.assume_multiple %11, 128 : i32
      %13 = arith.index_cast %c0_i32 : i32 to index
      %c0_4 = arith.constant 0 : index
      %14 = vector.load %arg2[%13, %c0_4] : memref<1x128xi32, #tpu.memory_space<vmem>>, vector<1x128xi32>
      %15 = arith.index_cast %12 : i32 to index
      %c0_5 = arith.constant 0 : index
      %16 = vector.load %arg3[%15, %c0_5] : memref<128x128xf32, #tpu.memory_space<vmem>>, vector<128x128xf32>
      %17 = vector.broadcast %0 : i32 to vector<1x128xi32>
      %18 = arith.subi %14, %17 : vector<1x128xi32>
      %19 = vector.broadcast %18 : vector<1x128xi32> to vector<256x128xi32>
      %20 = arith.cmpi eq, %3, %19 : vector<256x128xi32>
      %21 = arith.extui %20 : vector<256x128xi1> to vector<256x128xi32>
      %22 = arith.sitofp %21 : vector<256x128xi32> to vector<256x128xf32>
      %c0_6 = arith.constant 0 : index
      %c0_7 = arith.constant 0 : index
      %23 = vector.load %arg4[%c0_6, %c0_7] : memref<256x128xf32, #tpu.memory_space<vmem>>, vector<256x128xf32>
      %cst_8 = arith.constant dense<0.000000e+00> : vector<256x128xf32>
      %24 = tpu.matmul %22, %16, %cst_8 {dimension_numbers = #tpu.dot_dimension_numbers<[1], [0], [0], [1], [0, 0, 1, 1], [], []>} : vector<256x128xf32>, vector<128x128xf32>, vector<256x128xf32> -> vector<256x128xf32>
      %25 = arith.addf %23, %24 : vector<256x128xf32>
      %c0_9 = arith.constant 0 : index
      %c0_10 = arith.constant 0 : index
      %26 = vector.load %arg4[%c0_9, %c0_10] : memref<256x128xf32, #tpu.memory_space<vmem>>, vector<256x128xf32>
      tpu.vector_store %arg4[%c0_9, %c0_10], %25 {strides = array<i32>} : memref<256x128xf32, #tpu.memory_space<vmem>>, vector<256x128xf32>,
    } else {
    }
    %c1_i32_3 = arith.constant 1 : i32
    return
  }
  func.func @transform_0(%arg0: i32, %arg1: memref<1xi32, #tpu.memory_space<smem>>) -> (i32, i32) {
    %c0_i32 = arith.constant 0 : i32
    %c0_i32_0 = arith.constant 0 : i32
    %c0_i32_1 = arith.constant 0 : i32
    return %c0_i32, %c0_i32_0 : i32, i32
  }
  func.func @transform_1(%arg0: i32, %arg1: memref<1xi32, #tpu.memory_space<smem>>) -> (i32, i32) {
    %c0_i32 = arith.constant 0 : i32
    %c0_i32_0 = arith.constant 0 : i32
    %c0_i32_1 = arith.constant 0 : i32
    return %c0_i32, %c0_i32_0 : i32, i32
  }
  func.func @transform_2(%arg0: i32, %arg1: memref<1xi32, #tpu.memory_space<smem>>) -> (i32, i32) {
    %c0_i32 = arith.constant 0 : i32
    %c0_i32_0 = arith.constant 0 : i32
    return %arg0, %c0_i32 : i32, i32
  }
}

</mosaic_0001>

<llo_original>
// kernel: tpu_custom_call.1
$region0: #{tpu_custom_call.1}
  #allocation0 [shape = 'u32[]', space=smem, size = 0x4, offset = 0x4, fixed_abs, tag = 'smem constant byte address 0x4 - core index']
  #allocation1 [shape = 'u32[72,128]{1,0:T(1,128)}', space=vmem, size = 0x9000, scoped, tag = 'internal scratch']
  #allocation2 [shape = 's32[1]{0}', space=sflag, size = 0x4, scoped, tag = 'scoped memory for tpu_custom_call.1']
  #allocation3 [shape = 's32[1]{0:T(128)S(6)}', space=smem, size = 0x200, scoped, tag = 'prefetched SMEM operand 0']
  %s0 = inlined_call_operand.<no memory space> [shape: s32[1], index: 0, kind: input, shape index: {}]
  %s1 = inlined_call_operand.vmem [shape: s32[1,128], index: 1, kind: input, shape index: {}]
  %s2 = inlined_call_operand.hbm [shape: f32[128,128], index: 2, kind: input, shape index: {}]
  %s3 = inlined_call_operand.hbm [shape: f32[256,128], index: 3, kind: output, shape index: {}]
  %s4 = sld [smem:[#allocation0]]
  $region26: #{tpu_custom_call.1} parent=0
    _
  %s6 = ssub.s32 1, %s4
  %s7 = scalar_select 0, %s6, %s4
  %8 = sst [smem:[#allocation3]] %s0
  $region1: #{tpu_custom_call.1} parent=0
    #allocation4 [shape = 'u8[65536]{0}', space=vmem, size = 0x10000, scoped, tag = 'input window, operand 2, single buffered']
    #allocation5 [shape = 's32[1]{0}', space=sflag, size = 0x4, scoped, tag = 'scoped memory for tpu_custom_call.1']
    #allocation6 [shape = 's32[1]{0}', space=sflag, size = 0x4, scoped, tag = 'scoped memory for tpu_custom_call.1']
    #allocation7 [shape = 'u8[131072]{0}', space=vmem, size = 0x20000, scoped, tag = 'output window, operand 0, single buffered']
    %9 = vsyncpa [#allocation5], 0
    %10 = vsyncpa [#allocation6], 0
    // Predicated region
    $region2: #{tpu_custom_call.1} parent=1 // pred_check
      _
    $region3: #{tpu_custom_call.1} parent=1 // pred_check_branch
      %12 = sbr.rel (0) target = $region5
    $region4: #{tpu_custom_call.1} parent=1 // pred_region
      _
    $region5: #{tpu_custom_call.1} parent=1 // pred_fallthru
      _
    // Predicated region
    $region6: #{tpu_custom_call.1} parent=1 // pred_check
      _
    $region7: #{tpu_custom_call.1} parent=1 // pred_check_branch
      %14 = sbr.rel (0) target = $region9
    $region8: #{tpu_custom_call.1} parent=1 // pred_region
      %16 = vsyncadd [#allocation5], 0
      %s17 = sshll.u32 %s2, 4
      %s18 = int_to_ptr.hbm [resolvable:$true] %s17
      %s19 = sshll.u32 [#allocation4], 4
      %s20 = int_to_ptr.vmem [resolvable:$true] %s19
      %25 = dma.hbm_to_vmem [thread:$0]  %s18, 2048, %s20, [#allocation5], 128, 128, 8
    $region9: #{tpu_custom_call.1} parent=1 // pred_fallthru
      _
    // Predicated region
    $region10: #{tpu_custom_call.1} parent=1 // pred_check
      _
    $region11: #{tpu_custom_call.1} parent=1 // pred_check_branch
      %27 = sbr.rel (0) target = $region13
    $region12: #{tpu_custom_call.1} parent=1 // pred_region
      %29 = dma.done [#allocation5], 2048
    $region13: #{tpu_custom_call.1} parent=1 // pred_fallthru
      _
    %s30 = smul.u32 0, 256
    %31 = vst [vmem:[#allocation7] sm:$0xff] 0.0
    %32 = vst [vmem:[#allocation7 + $0x8] sm:$0xff] 0.0
    %33 = vst [vmem:[#allocation7 + $0x10] sm:$0xff] 0.0
    %34 = vst [vmem:[#allocation7 + $0x18] sm:$0xff] 0.0
    %35 = vst [vmem:[#allocation7 + $0x20] sm:$0xff] 0.0
    %36 = vst [vmem:[#allocation7 + $0x28] sm:$0xff] 0.0
    %37 = vst [vmem:[#allocation7 + $0x30] sm:$0xff] 0.0
    %38 = vst [vmem:[#allocation7 + $0x38] sm:$0xff] 0.0
    %39 = vst [vmem:[#allocation7 + $0x40] sm:$0xff] 0.0
    %40 = vst [vmem:[#allocation7 + $0x48] sm:$0xff] 0.0
    %41 = vst [vmem:[#allocation7 + $0x50] sm:$0xff] 0.0
    %42 = vst [vmem:[#allocation7 + $0x58] sm:$0xff] 0.0
    %43 = vst [vmem:[#allocation7 + $0x60] sm:$0xff] 0.0
    %44 = vst [vmem:[#allocation7 + $0x68] sm:$0xff] 0.0
    %45 = vst [vmem:[#allocation7 + $0x70] sm:$0xff] 0.0
    %46 = vst [vmem:[#allocation7 + $0x78] sm:$0xff] 0.0
    %47 = vst [vmem:[#allocation7 + $0x80] sm:$0xff] 0.0
    %48 = vst [vmem:[#allocation7 + $0x88] sm:$0xff] 0.0
    %49 = vst [vmem:[#allocation7 + $0x90] sm:$0xff] 0.0
    %50 = vst [vmem:[#allocation7 + $0x98] sm:$0xff] 0.0
    %51 = vst [vmem:[#allocation7 + $0xa0] sm:$0xff] 0.0
    %52 = vst [vmem:[#allocation7 + $0xa8] sm:$0xff] 0.0
    %53 = vst [vmem:[#allocation7 + $0xb0] sm:$0xff] 0.0
    %54 = vst [vmem:[#allocation7 + $0xb8] sm:$0xff] 0.0
    %55 = vst [vmem:[#allocation7 + $0xc0] sm:$0xff] 0.0
    %56 = vst [vmem:[#allocation7 + $0xc8] sm:$0xff] 0.0
    %57 = vst [vmem:[#allocation7 + $0xd0] sm:$0xff] 0.0
    %58 = vst [vmem:[#allocation7 + $0xd8] sm:$0xff] 0.0
    %59 = vst [vmem:[#allocation7 + $0xe0] sm:$0xff] 0.0
    %60 = vst [vmem:[#allocation7 + $0xe8] sm:$0xff] 0.0
    %61 = vst [vmem:[#allocation7 + $0xf0] sm:$0xff] 0.0
    %62 = vst [vmem:[#allocation7 + $0xf8] sm:$0xff] 0.0
    %v63 = vlaneseq
    %v64 = vshrl.u32 %v63, 7
    %v65 = vadd.s32 %v64, 8
    %v66 = vadd.s32 %v64, 16
    %v67 = vadd.s32 %v64, 24
    %v68 = vadd.s32 %v64, 32
    %v69 = vadd.s32 %v64, 40
    %v70 = vadd.s32 %v64, 48
    %v71 = vadd.s32 %v64, 56
    %v72 = vadd.s32 %v64, 64
    %v73 = vadd.s32 %v64, 72
    %v74 = vadd.s32 %v64, 80
    %v75 = vadd.s32 %v64, 88
    %v76 = vadd.s32 %v64, 96
    %v77 = vadd.s32 %v64, 104
    %v78 = vadd.s32 %v64, 112
    %v79 = vadd.s32 %v64, 120
    %v80 = vadd.s32 %v64, 128
    %v81 = vadd.s32 %v64, 136
    %v82 = vadd.s32 %v64, 144
    %v83 = vadd.s32 %v64, 152
    %v84 = vadd.s32 %v64, 160
    %v85 = vadd.s32 %v64, 168
    %v86 = vadd.s32 %v64, 176
    %v87 = vadd.s32 %v64, 184
    %v88 = vadd.s32 %v64, 192
    %v89 = vadd.s32 %v64, 200
    %v90 = vadd.s32 %v64, 208
    %v91 = vadd.s32 %v64, 216
    %v92 = vadd.s32 %v64, 224
    %v93 = vadd.s32 %v64, 232
    %v94 = vadd.s32 %v64, 240
    %v95 = vadd.s32 %v64, 248
    %s96 = sld [smem:[#allocation3]]
    %p97 = scmp.gt.s32.totalorder %s96, 0
    // Predicated region
    $region14: #{tpu_custom_call.1} parent=1 // pred_check
      %p98 = pneg %p97
    $region15: #{tpu_custom_call.1} parent=1 // pred_check_branch
      %100 = sbr.rel (%p98) target = $region17
    $region16: #{tpu_custom_call.1} parent=1 // pred_region
      %v101 = vld [vmem:[%s1] sm:$0x1]
      %v102 = vld [vmem:[#allocation4] sm:$0xff]
      %v103 = vld [vmem:[#allocation4 + $0x8] sm:$0xff]
      %v104 = vld [vmem:[#allocation4 + $0x10] sm:$0xff]
      %v105 = vld [vmem:[#allocation4 + $0x18] sm:$0xff]
      %v106 = vld [vmem:[#allocation4 + $0x20] sm:$0xff]
      %v107 = vld [vmem:[#allocation4 + $0x28] sm:$0xff]
      %v108 = vld [vmem:[#allocation4 + $0x30] sm:$0xff]
      %v109 = vld [vmem:[#allocation4 + $0x38] sm:$0xff]
      %v110 = vld [vmem:[#allocation4 + $0x40] sm:$0xff]
      %v111 = vld [vmem:[#allocation4 + $0x48] sm:$0xff]
      %v112 = vld [vmem:[#allocation4 + $0x50] sm:$0xff]
      %v113 = vld [vmem:[#allocation4 + $0x58] sm:$0xff]
      %v114 = vld [vmem:[#allocation4 + $0x60] sm:$0xff]
      %v115 = vld [vmem:[#allocation4 + $0x68] sm:$0xff]
      %v116 = vld [vmem:[#allocation4 + $0x70] sm:$0xff]
      %v117 = vld [vmem:[#allocation4 + $0x78] sm:$0xff]
      %v118 = vstv %s30
      %v119 = vsub.s32 %v101, %v118
      %v120 = vperm.slane %v119, 0
      %vm121 = vcmp.eq.s32.totalorder %v64, %v120
      %vm122 = vcmp.eq.s32.totalorder %v65, %v120
      %vm123 = vcmp.eq.s32.totalorder %v66, %v120
      %vm124 = vcmp.eq.s32.totalorder %v67, %v120
      %vm125 = vcmp.eq.s32.totalorder %v68, %v120
      %vm126 = vcmp.eq.s32.totalorder %v69, %v120
      %vm127 = vcmp.eq.s32.totalorder %v70, %v120
      %vm128 = vcmp.eq.s32.totalorder %v71, %v120
      %vm129 = vcmp.eq.s32.totalorder %v72, %v120
      %vm130 = vcmp.eq.s32.totalorder %v73, %v120
      %vm131 = vcmp.eq.s32.totalorder %v74, %v120
      %vm132 = vcmp.eq.s32.totalorder %v75, %v120
      %vm133 = vcmp.eq.s32.totalorder %v76, %v120
      %vm134 = vcmp.eq.s32.totalorder %v77, %v120
      %vm135 = vcmp.eq.s32.totalorder %v78, %v120
      %vm136 = vcmp.eq.s32.totalorder %v79, %v120
      %vm137 = vcmp.eq.s32.totalorder %v80, %v120
      %vm138 = vcmp.eq.s32.totalorder %v81, %v120
      %vm139 = vcmp.eq.s32.totalorder %v82, %v120
      %vm140 = vcmp.eq.s32.totalorder %v83, %v120
      %vm141 = vcmp.eq.s32.totalorder %v84, %v120
      %vm142 = vcmp.eq.s32.totalorder %v85, %v120
      %vm143 = vcmp.eq.s32.totalorder %v86, %v120
      %vm144 = vcmp.eq.s32.totalorder %v87, %v120
      %vm145 = vcmp.eq.s32.totalorder %v88, %v120
      %vm146 = vcmp.eq.s32.totalorder %v89, %v120
      %vm147 = vcmp.eq.s32.totalorder %v90, %v120
      %vm148 = vcmp.eq.s32.totalorder %v91, %v120
      %vm149 = vcmp.eq.s32.totalorder %v92, %v120
      %vm150 = vcmp.eq.s32.totalorder %v93, %v120
      %vm151 = vcmp.eq.s32.totalorder %v94, %v120
      %vm152 = vcmp.eq.s32.totalorder %v95, %v120
      %v153 = vsel %vm121, 1, 0
      %v154 = vsel %vm122, 1, 0
      %v155 = vsel %vm123, 1, 0
      %v156 = vsel %vm124, 1, 0
      %v157 = vsel %vm125, 1, 0
      %v158 = vsel %vm126, 1, 0
      %v159 = vsel %vm127, 1, 0
      %v160 = vsel %vm128, 1, 0
      %v161 = vsel %vm129, 1, 0
      %v162 = vsel %vm130, 1, 0
      %v163 = vsel %vm131, 1, 0
      %v164 = vsel %vm132, 1, 0
      %v165 = vsel %vm133, 1, 0
      %v166 = vsel %vm134, 1, 0
      %v167 = vsel %vm135, 1, 0
      %v168 = vsel %vm136, 1, 0
      %v169 = vsel %vm137, 1, 0
      %v170 = vsel %vm138, 1, 0
      %v171 = vsel %vm139, 1, 0
      %v172 = vsel %vm140, 1, 0
      %v173 = vsel %vm141, 1, 0
      %v174 = vsel %vm142, 1, 0
      %v175 = vsel %vm143, 1, 0
      %v176 = vsel %vm144, 1, 0
      %v177 = vsel %vm145, 1, 0
      %v178 = vsel %vm146, 1, 0
      %v179 = vsel %vm147, 1, 0
      %v180 = vsel %vm148, 1, 0
      %v181 = vsel %vm149, 1, 0
      %v182 = vsel %vm150, 1, 0
      %v183 = vsel %vm151, 1, 0
      %v184 = vsel %vm152, 1, 0
      %v185 = vcvt.s32.f32 %v153
      %v186 = vcvt.s32.f32 %v154
      %v187 = vcvt.s32.f32 %v155
      %v188 = vcvt.s32.f32 %v156
      %v189 = vcvt.s32.f32 %v157
      %v190 = vcvt.s32.f32 %v158
      %v191 = vcvt.s32.f32 %v159
      %v192 = vcvt.s32.f32 %v160
      %v193 = vcvt.s32.f32 %v161
      %v194 = vcvt.s32.f32 %v162
      %v195 = vcvt.s32.f32 %v163
      %v196 = vcvt.s32.f32 %v164
      %v197 = vcvt.s32.f32 %v165
      %v198 = vcvt.s32.f32 %v166
      %v199 = vcvt.s32.f32 %v167
      %v200 = vcvt.s32.f32 %v168
      %v201 = vcvt.s32.f32 %v169
      %v202 = vcvt.s32.f32 %v170
      %v203 = vcvt.s32.f32 %v171
      %v204 = vcvt.s32.f32 %v172
      %v205 = vcvt.s32.f32 %v173
      %v206 = vcvt.s32.f32 %v174
      %v207 = vcvt.s32.f32 %v175
      %v208 = vcvt.s32.f32 %v176
      %v209 = vcvt.s32.f32 %v177
      %v210 = vcvt.s32.f32 %v178
      %v211 = vcvt.s32.f32 %v179
      %v212 = vcvt.s32.f32 %v180
      %v213 = vcvt.s32.f32 %v181
      %v214 = vcvt.s32.f32 %v182
      %v215 = vcvt.s32.f32 %v183
      %v216 = vcvt.s32.f32 %v184
      %v217 = vld [vmem:[#allocation7] sm:$0xff]
      %v218 = vld [vmem:[#allocation7 + $0x8] sm:$0xff]
      %v219 = vld [vmem:[#allocation7 + $0x10] sm:$0xff]
      %v220 = vld [vmem:[#allocation7 + $0x18] sm:$0xff]
      %v221 = vld [vmem:[#allocation7 + $0x20] sm:$0xff]
      %v222 = vld [vmem:[#allocation7 + $0x28] sm:$0xff]
      %v223 = vld [vmem:[#allocation7 + $0x30] sm:$0xff]
      %v224 = vld [vmem:[#allocation7 + $0x38] sm:$0xff]
      %v225 = vld [vmem:[#allocation7 + $0x40] sm:$0xff]
      %v226 = vld [vmem:[#allocation7 + $0x48] sm:$0xff]
      %v227 = vld [vmem:[#allocation7 + $0x50] sm:$0xff]
      %v228 = vld [vmem:[#allocation7 + $0x58] sm:$0xff]
      %v229 = vld [vmem:[#allocation7 + $0x60] sm:$0xff]
      %v230 = vld [vmem:[#allocation7 + $0x68] sm:$0xff]
      %v231 = vld [vmem:[#allocation7 + $0x70] sm:$0xff]
      %v232 = vld [vmem:[#allocation7 + $0x78] sm:$0xff]
      %v233 = vld [vmem:[#allocation7 + $0x80] sm:$0xff]
      %v234 = vld [vmem:[#allocation7 + $0x88] sm:$0xff]
      %v235 = vld [vmem:[#allocation7 + $0x90] sm:$0xff]
      %v236 = vld [vmem:[#allocation7 + $0x98] sm:$0xff]
      %v237 = vld [vmem:[#allocation7 + $0xa0] sm:$0xff]
      %v238 = vld [vmem:[#allocation7 + $0xa8] sm:$0xff]
      %v239 = vld [vmem:[#allocation7 + $0xb0] sm:$0xff]
      %v240 = vld [vmem:[#allocation7 + $0xb8] sm:$0xff]
      %v241 = vld [vmem:[#allocation7 + $0xc0] sm:$0xff]
      %v242 = vld [vmem:[#allocation7 + $0xc8] sm:$0xff]
      %v243 = vld [vmem:[#allocation7 + $0xd0] sm:$0xff]
      %v244 = vld [vmem:[#allocation7 + $0xd8] sm:$0xff]
      %v245 = vld [vmem:[#allocation7 + $0xe0] sm:$0xff]
      %v246 = vld [vmem:[#allocation7 + $0xe8] sm:$0xff]
      %v247 = vld [vmem:[#allocation7 + $0xf0] sm:$0xff]
      %v248 = vld [vmem:[#allocation7 + $0xf8] sm:$0xff]
      %249 = vmatpush.msra.mxu0 %v117
      %250 = vmatpush.msra.mxu0 %v116
      %251 = vmatpush.msra.mxu0 %v115
      %252 = vmatpush.msra.mxu0 %v114
      %253 = vmatpush.msra.mxu0 %v113
      %254 = vmatpush.msra.mxu0 %v112
      %255 = vmatpush.msra.mxu0 %v111
      %256 = vmatpush.msra.mxu0 %v110
      %257 = vmatpush.msra.mxu0 %v109
      %258 = vmatpush.msra.mxu0 %v108
      %259 = vmatpush.msra.mxu0 %v107
      %260 = vmatpush.msra.mxu0 %v106
      %261 = vmatpush.msra.mxu0 %v105
      %262 = vmatpush.msra.mxu0 %v104
      %263 = vmatpush.msra.mxu0 %v103
      %264 = vmatpush.msra.mxu0 %v102
      %265 = vmatmul.f32.gmra.mxu0 %v185
      %v266 = vpop.f32.mrf.mxu0
      %v267 = vadd.f32 0.0, %v266
      %268 = vmatmul.f32.gmra.mxu0 %v186
      %v269 = vpop.f32.mrf.mxu0
      %v270 = vadd.f32 0.0, %v269
      %271 = vmatmul.f32.gmra.mxu0 %v187
      %v272 = vpop.f32.mrf.mxu0
      %v273 = vadd.f32 0.0, %v272
      %274 = vmatmul.f32.gmra.mxu0 %v188
      %v275 = vpop.f32.mrf.mxu0
      %v276 = vadd.f32 0.0, %v275
      %277 = vmatmul.f32.gmra.mxu0 %v189
      %v278 = vpop.f32.mrf.mxu0
      %v279 = vadd.f32 0.0, %v278
      %280 = vmatmul.f32.gmra.mxu0 %v190
      %v281 = vpop.f32.mrf.mxu0
      %v282 = vadd.f32 0.0, %v281
      %283 = vmatmul.f32.gmra.mxu0 %v191
      %v284 = vpop.f32.mrf.mxu0
      %v285 = vadd.f32 0.0, %v284
      %286 = vmatmul.f32.gmra.mxu0 %v192
      %v287 = vpop.f32.mrf.mxu0
      %v288 = vadd.f32 0.0, %v287
      %289 = vmatmul.f32.gmra.mxu0 %v193
      %v290 = vpop.f32.mrf.mxu0
      %v291 = vadd.f32 0.0, %v290
      %292 = vmatmul.f32.gmra.mxu0 %v194
      %v293 = vpop.f32.mrf.mxu0
      %v294 = vadd.f32 0.0, %v293
      %295 = vmatmul.f32.gmra.mxu0 %v195
      %v296 = vpop.f32.mrf.mxu0
      %v297 = vadd.f32 0.0, %v296
      %298 = vmatmul.f32.gmra.mxu0 %v196
      %v299 = vpop.f32.mrf.mxu0
      %v300 = vadd.f32 0.0, %v299
      %301 = vmatmul.f32.gmra.mxu0 %v197
      %v302 = vpop.f32.mrf.mxu0
      %v303 = vadd.f32 0.0, %v302
      %304 = vmatmul.f32.gmra.mxu0 %v198
      %v305 = vpop.f32.mrf.mxu0
      %v306 = vadd.f32 0.0, %v305
      %307 = vmatmul.f32.gmra.mxu0 %v199
      %v308 = vpop.f32.mrf.mxu0
      %v309 = vadd.f32 0.0, %v308
      %310 = vmatmul.f32.gmra.mxu0 %v200
      %v311 = vpop.f32.mrf.mxu0
      %v312 = vadd.f32 0.0, %v311
      %313 = vmatmul.f32.gmra.mxu0 %v201
      %v314 = vpop.f32.mrf.mxu0
      %v315 = vadd.f32 0.0, %v314
      %316 = vmatmul.f32.gmra.mxu0 %v202
      %v317 = vpop.f32.mrf.mxu0
      %v318 = vadd.f32 0.0, %v317
      %319 = vmatmul.f32.gmra.mxu0 %v203
      %v320 = vpop.f32.mrf.mxu0
      %v321 = vadd.f32 0.0, %v320
      %322 = vmatmul.f32.gmra.mxu0 %v204
      %v323 = vpop.f32.mrf.mxu0
      %v324 = vadd.f32 0.0, %v323
      %325 = vmatmul.f32.gmra.mxu0 %v205
      %v326 = vpop.f32.mrf.mxu0
      %v327 = vadd.f32 0.0, %v326
      %328 = vmatmul.f32.gmra.mxu0 %v206
      %v329 = vpop.f32.mrf.mxu0
      %v330 = vadd.f32 0.0, %v329
      %331 = vmatmul.f32.gmra.mxu0 %v207
      %v332 = vpop.f32.mrf.mxu0
      %v333 = vadd.f32 0.0, %v332
      %334 = vmatmul.f32.gmra.mxu0 %v208
      %v335 = vpop.f32.mrf.mxu0
      %v336 = vadd.f32 0.0, %v335
      %337 = vmatmul.f32.gmra.mxu0 %v209
      %v338 = vpop.f32.mrf.mxu0
      %v339 = vadd.f32 0.0, %v338
      %340 = vmatmul.f32.gmra.mxu0 %v210
      %v341 = vpop.f32.mrf.mxu0
      %v342 = vadd.f32 0.0, %v341
      %343 = vmatmul.f32.gmra.mxu0 %v211
      %v344 = vpop.f32.mrf.mxu0
      %v345 = vadd.f32 0.0, %v344
      %346 = vmatmul.f32.gmra.mxu0 %v212
      %v347 = vpop.f32.mrf.mxu0
      %v348 = vadd.f32 0.0, %v347
      %349 = vmatmul.f32.gmra.mxu0 %v213
      %v350 = vpop.f32.mrf.mxu0
      %v351 = vadd.f32 0.0, %v350
      %352 = vmatmul.f32.gmra.mxu0 %v214
      %v353 = vpop.f32.mrf.mxu0
      %v354 = vadd.f32 0.0, %v353
      %355 = vmatmul.f32.gmra.mxu0 %v215
      %v356 = vpop.f32.mrf.mxu0
      %v357 = vadd.f32 0.0, %v356
      %358 = vmatmul.f32.gmra.mxu0 %v216
      %v359 = vpop.f32.mrf.mxu0
      %v360 = vadd.f32 0.0, %v359
      %361 = vdwg.mxu0
      %v362 = vadd.f32 %v217, %v267
      %v363 = vadd.f32 %v218, %v270
      %v364 = vadd.f32 %v219, %v273
      %v365 = vadd.f32 %v220, %v276
      %v366 = vadd.f32 %v221, %v279
      %v367 = vadd.f32 %v222, %v282
      %v368 = vadd.f32 %v223, %v285
      %v369 = vadd.f32 %v224, %v288
      %v370 = vadd.f32 %v225, %v291
      %v371 = vadd.f32 %v226, %v294
      %v372 = vadd.f32 %v227, %v297
      %v373 = vadd.f32 %v228, %v300
      %v374 = vadd.f32 %v229, %v303
      %v375 = vadd.f32 %v230, %v306
      %v376 = vadd.f32 %v231, %v309
      %v377 = vadd.f32 %v232, %v312
      %v378 = vadd.f32 %v233, %v315
      %v379 = vadd.f32 %v234, %v318
      %v380 = vadd.f32 %v235, %v321
      %v381 = vadd.f32 %v236, %v324
      %v382 = vadd.f32 %v237, %v327
      %v383 = vadd.f32 %v238, %v330
      %v384 = vadd.f32 %v239, %v333
      %v385 = vadd.f32 %v240, %v336
      %v386 = vadd.f32 %v241, %v339
      %v387 = vadd.f32 %v242, %v342
      %v388 = vadd.f32 %v243, %v345
      %v389 = vadd.f32 %v244, %v348
      %v390 = vadd.f32 %v245, %v351
      %v391 = vadd.f32 %v246, %v354
      %v392 = vadd.f32 %v247, %v357
      %v393 = vadd.f32 %v248, %v360
      %394 = vst [vmem:[#allocation7] sm:$0xff] %v362
      %395 = vst [vmem:[#allocation7 + $0x8] sm:$0xff] %v363
      %396 = vst [vmem:[#allocation7 + $0x10] sm:$0xff] %v364
      %397 = vst [vmem:[#allocation7 + $0x18] sm:$0xff] %v365
      %398 = vst [vmem:[#allocation7 + $0x20] sm:$0xff] %v366
      %399 = vst [vmem:[#allocation7 + $0x28] sm:$0xff] %v367
      %400 = vst [vmem:[#allocation7 + $0x30] sm:$0xff] %v368
      %401 = vst [vmem:[#allocation7 + $0x38] sm:$0xff] %v369
      %402 = vst [vmem:[#allocation7 + $0x40] sm:$0xff] %v370
      %403 = vst [vmem:[#allocation7 + $0x48] sm:$0xff] %v371
      %404 = vst [vmem:[#allocation7 + $0x50] sm:$0xff] %v372
      %405 = vst [vmem:[#allocation7 + $0x58] sm:$0xff] %v373
      %406 = vst [vmem:[#allocation7 + $0x60] sm:$0xff] %v374
      %407 = vst [vmem:[#allocation7 + $0x68] sm:$0xff] %v375
      %408 = vst [vmem:[#allocation7 + $0x70] sm:$0xff] %v376
      %409 = vst [vmem:[#allocation7 + $0x78] sm:$0xff] %v377
      %410 = vst [vmem:[#allocation7 + $0x80] sm:$0xff] %v378
      %411 = vst [vmem:[#allocation7 + $0x88] sm:$0xff] %v379
      %412 = vst [vmem:[#allocation7 + $0x90] sm:$0xff] %v380
      %413 = vst [vmem:[#allocation7 + $0x98] sm:$0xff] %v381
      %414 = vst [vmem:[#allocation7 + $0xa0] sm:$0xff] %v382
      %415 = vst [vmem:[#allocation7 + $0xa8] sm:$0xff] %v383
      %416 = vst [vmem:[#allocation7 + $0xb0] sm:$0xff] %v384
      %417 = vst [vmem:[#allocation7 + $0xb8] sm:$0xff] %v385
      %418 = vst [vmem:[#allocation7 + $0xc0] sm:$0xff] %v386
      %419 = vst [vmem:[#allocation7 + $0xc8] sm:$0xff] %v387
      %420 = vst [vmem:[#allocation7 + $0xd0] sm:$0xff] %v388
      %421 = vst [vmem:[#allocation7 + $0xd8] sm:$0xff] %v389
      %422 = vst [vmem:[#allocation7 + $0xe0] sm:$0xff] %v390
      %423 = vst [vmem:[#allocation7 + $0xe8] sm:$0xff] %v391
      %424 = vst [vmem:[#allocation7 + $0xf0] sm:$0xff] %v392
      %425 = vst [vmem:[#allocation7 + $0xf8] sm:$0xff] %v393
    $region17: #{tpu_custom_call.1} parent=1 // pred_fallthru
      _
    // Predicated region
    $region18: #{tpu_custom_call.1} parent=1 // pred_check
      _
    $region19: #{tpu_custom_call.1} parent=1 // pred_check_branch
      %427 = sbr.rel (0) target = $region21
    $region20: #{tpu_custom_call.1} parent=1 // pred_region
      %429 = vsyncadd [#allocation6], 0
      %s430 = sshll.u32 [#allocation7], 4
      %s431 = int_to_ptr.vmem [resolvable:$true] %s430
      %s432 = sshll.u32 %s3, 4
      %s433 = int_to_ptr.hbm [resolvable:$true] %s432
      %438 = dma.vmem_to_hbm [thread:$0]  %s431, 4096, %s433, [#allocation6], 128, 128, 8
    $region21: #{tpu_custom_call.1} parent=1 // pred_fallthru
      _
    // Predicated region
    $region22: #{tpu_custom_call.1} parent=1 // pred_check
      _
    $region23: #{tpu_custom_call.1} parent=1 // pred_check_branch
      %440 = sbr.rel (0) target = $region25
    $region24: #{tpu_custom_call.1} parent=1 // pred_region
      %442 = dma.done [#allocation6], 4096
    $region25: #{tpu_custom_call.1} parent=1 // pred_fallthru
      _
    %443 = vsyncpa [#allocation5], 1
    %444 = vsyncpa [#allocation6], 1

</llo_original>
